<compile_context>
chip_gen: v7x
topology: tpu7x:2x2x1
jax: 0.10.0
libtpu: 0.0.40
codegen_flags: <defaults>
</compile_context>

<pallas_src>
import jax
import jax.numpy as jnp
from jax.experimental import pallas as pl
from jax.experimental.pallas import tpu as pltpu  # noqa: F401  (TPU backend)


def lstm_kernel(len_ref, emb_ref, wih_ref, whh_ref, b_ref, wfc_ref, bfc_ref, out_ref):
    # len_ref : (Bp, 1) int32    lengths (0 for padded rows)
    # emb_ref : (T*Bp, E)        embedded tokens, time-major, batch-padded, flattened
    # wih_ref : (E, 4H)          W_ih^T
    # whh_ref : (H, 4H)          W_hh^T
    # b_ref   : (1, 4H)          b_ih + b_hh
    # wfc_ref : (H, Op)          W_fc^T, lane-padded
    # bfc_ref : (1, Op)          b_fc, lane-padded
    # out_ref : (Bp, Op)         logits (padded)
    Bp = len_ref.shape[0]
    TB, E = emb_ref.shape
    T = TB // Bp
    H = whh_ref.shape[0]

    # ---- Phase 1: hoisted input projection — one big MXU matmul, bias added once ----
    gx = (jnp.dot(emb_ref[...], wih_ref[...], preferred_element_type=jnp.float32)
          + b_ref[...])                                      # (T*Bp, 4H)

    # ---- Loop-invariant loads, hoisted out of the recurrence ----
    whh = whh_ref[...]                                       # (H, 4H)
    lens = len_ref[...]                                      # (Bp, 1) int32

    h = jnp.zeros((Bp, H), jnp.float32)
    c = jnp.zeros((Bp, H), jnp.float32)

    # ---- Phase 2: recurrence, fully unrolled (T is static) ----
    for t in range(T):
        # Only the truly sequential matmul stays on the critical path.
        gates = gx[t * Bp:(t + 1) * Bp, :] + jnp.dot(
            h, whh, preferred_element_type=jnp.float32)       # (Bp, 4H)

        # Two whole-tile EUP passes instead of four fragmented per-gate launches.
        sg = jax.nn.sigmoid(gates)
        th = jnp.tanh(gates)
        i_g = sg[:, 0 * H:1 * H]
        f_g = sg[:, 1 * H:2 * H]
        g_g = th[:, 2 * H:3 * H]
        o_g = sg[:, 3 * H:4 * H]

        c_new = f_g * c + i_g * g_g
        h_new = o_g * jnp.tanh(c_new)

        # packed-sequence semantics: freeze (h, c) once t >= length[b]
        mask = t < lens                                       # (Bp, 1) bool
        h = jnp.where(mask, h_new, h)
        c = jnp.where(mask, c_new, c)

    # ---- Final linear layer; (Bp, Op) = (8, 128) -> full-tile unmasked store ----
    out_ref[...] = (jnp.dot(h, wfc_ref[...], preferred_element_type=jnp.float32)
                    + bfc_ref[...])


def lstm_model_forward(text, lengths, emb_table, w_ih, w_hh, b_ih, b_hh, w_fc, b_fc):
    """Full LSTMModel.forward. Embedding gather + padding is glue (plain JAX); the
    input projection, LSTM recurrence, and final linear layer run inside the kernel."""
    B, T = text.shape
    E = emb_table.shape[1]
    H = w_hh.shape[1]
    O = w_fc.shape[0]

    Bp = max(8, ((B + 7) // 8) * 8)        # sublane-pad batch to a multiple of 8
    Op = ((O + 127) // 128) * 128          # lane-pad output dim to a multiple of 128

    # Embedding gather directly in time-major order: (T, B, E) — no transpose copy.
    emb_tbe = jnp.take(emb_table, text.T.astype(jnp.int32), axis=0)
    emb_pad = jnp.zeros((T, Bp, E), jnp.float32).at[:, :B, :].set(
        emb_tbe.astype(jnp.float32))
    emb2d = emb_pad.reshape(T * Bp, E)     # contiguous (free) flatten in the wrapper

    lens_pad = jnp.zeros((Bp, 1), jnp.int32).at[:B, 0].set(lengths.astype(jnp.int32))

    wih_t = w_ih.T.astype(jnp.float32)                      # (E, 4H)
    whh_t = w_hh.T.astype(jnp.float32)                      # (H, 4H)
    bias = (b_ih + b_hh).astype(jnp.float32)[None, :]       # (1, 4H)
    wfc_pad = jnp.zeros((H, Op), jnp.float32).at[:, :O].set(w_fc.T.astype(jnp.float32))
    bfc_pad = jnp.zeros((1, Op), jnp.float32).at[0, :O].set(b_fc.astype(jnp.float32))

    out_pad = pl.pallas_call(
        lstm_kernel,
        out_shape=jax.ShapeDtypeStruct((Bp, Op), jnp.float32),
    )(lens_pad, emb2d, wih_t, whh_t, bias, wfc_pad, bfc_pad)

    return out_pad[:B, :O]


def lstm_model_reference(text, lengths, emb_table, w_ih, w_hh, b_ih, b_hh, w_fc, b_fc):
    """Pure-JAX reference with identical semantics (for correctness check)."""
    B, T = text.shape
    H = w_hh.shape[1]
    embedded = jnp.take(emb_table, text, axis=0)  # (B, T, E)
    h = jnp.zeros((B, H), jnp.float32)
    c = jnp.zeros((B, H), jnp.float32)
    for t in range(T):
        x_t = embedded[:, t, :]
        gates = x_t @ w_ih.T + h @ w_hh.T + b_ih + b_hh
        i_g = jax.nn.sigmoid(gates[:, 0 * H:1 * H])
        f_g = jax.nn.sigmoid(gates[:, 1 * H:2 * H])
        g_g = jnp.tanh(gates[:, 2 * H:3 * H])
        o_g = jax.nn.sigmoid(gates[:, 3 * H:4 * H])
        c_new = f_g * c + i_g * g_g
        h_new = o_g * jnp.tanh(c_new)
        mask = (t < lengths)[:, None]
        h = jnp.where(mask, h_new, h)
        c = jnp.where(mask, c_new, c)
    return h @ w_fc.T + b_fc


if __name__ == "__main__":
    # Small shapes consistent with the module: batch=2, seq=8, embed=32, hidden=32, out=2.
    VOCAB, E, H, O, B, T = 50, 32, 32, 2, 2, 8

    key = jax.random.PRNGKey(0)
    k_emb, k_wih, k_whh, k_bih, k_bhh, k_wfc, k_bfc, k_txt = jax.random.split(key, 8)

    emb_table = jax.random.normal(k_emb, (VOCAB, E), jnp.float32)
    w_ih = jax.random.normal(k_wih, (4 * H, E), jnp.float32) * 0.1
    w_hh = jax.random.normal(k_whh, (4 * H, H), jnp.float32) * 0.1
    b_ih = jax.random.normal(k_bih, (4 * H,), jnp.float32) * 0.1
    b_hh = jax.random.normal(k_bhh, (4 * H,), jnp.float32) * 0.1
    w_fc = jax.random.normal(k_wfc, (O, H), jnp.float32) * 0.1
    b_fc = jax.random.normal(k_bfc, (O,), jnp.float32) * 0.1

    text = jax.random.randint(k_txt, (B, T), 0, VOCAB, dtype=jnp.int32)
    lengths = jnp.array([5, 8], dtype=jnp.int32)  # variable lengths (padded to T)

    out = lstm_model_forward(text, lengths, emb_table, w_ih, w_hh,
                             b_ih, b_hh, w_fc, b_fc)
    out = jax.block_until_ready(out)

    ref = lstm_model_reference(text, lengths, emb_table, w_ih, w_hh,
                               b_ih, b_hh, w_fc, b_fc)
    assert out.shape == (B, O)
    assert jnp.allclose(out, ref, atol=1e-4, rtol=1e-4), (out, ref)

    print("KERNEL_OK")
</pallas_src>

<mosaic_0001>
module attributes {stable_mosaic.version = 11 : i64} {
  func.func @lstm_kernel(%arg0: memref<8x1xi32, #tpu.memory_space<vmem>>, %arg1: memref<64x32xf32, #tpu.memory_space<vmem>>, %arg2: memref<32x128xf32, #tpu.memory_space<vmem>>, %arg3: memref<32x128xf32, #tpu.memory_space<vmem>>, %arg4: memref<1x128xf32, #tpu.memory_space<vmem>>, %arg5: memref<32x128xf32, #tpu.memory_space<vmem>>, %arg6: memref<1x128xf32, #tpu.memory_space<vmem>>, %arg7: memref<8x128xf32, #tpu.memory_space<vmem>>) attributes {dimension_semantics = [], scalar_prefetch = 0 : i64, scratch_operands = 0 : i64, tpu.core_type = #tpu.core_type<tc>} {
    %c0 = arith.constant 0 : index
    %c0_0 = arith.constant 0 : index
    %0 = vector.load %arg1[%c0, %c0_0] : memref<64x32xf32, #tpu.memory_space<vmem>>, vector<64x32xf32>
    %c0_1 = arith.constant 0 : index
    %c0_2 = arith.constant 0 : index
    %1 = vector.load %arg2[%c0_1, %c0_2] : memref<32x128xf32, #tpu.memory_space<vmem>>, vector<32x128xf32>
    %cst = arith.constant dense<0.000000e+00> : vector<64x128xf32>
    %2 = tpu.matmul %0, %1, %cst {dimension_numbers = #tpu.dot_dimension_numbers<[1], [0], [0], [1], [0, 0, 1, 1], [], []>} : vector<64x32xf32>, vector<32x128xf32>, vector<64x128xf32> -> vector<64x128xf32>
    %c0_3 = arith.constant 0 : index
    %c0_4 = arith.constant 0 : index
    %3 = vector.load %arg4[%c0_3, %c0_4] : memref<1x128xf32, #tpu.memory_space<vmem>>, vector<1x128xf32>
    %4 = vector.broadcast %3 : vector<1x128xf32> to vector<64x128xf32>
    %5 = arith.addf %2, %4 : vector<64x128xf32>
    %c0_5 = arith.constant 0 : index
    %c0_6 = arith.constant 0 : index
    %6 = vector.load %arg3[%c0_5, %c0_6] : memref<32x128xf32, #tpu.memory_space<vmem>>, vector<32x128xf32>
    %c0_7 = arith.constant 0 : index
    %c0_8 = arith.constant 0 : index
    %7 = vector.load %arg0[%c0_7, %c0_8] : memref<8x1xi32, #tpu.memory_space<vmem>>, vector<8x1xi32>
    %cst_9 = arith.constant 0.000000e+00 : f32
    %8 = vector.broadcast %cst_9 : f32 to vector<8x32xf32>
    %cst_10 = arith.constant 0.000000e+00 : f32
    %9 = vector.broadcast %cst_10 : f32 to vector<8x32xf32>
    %10 = vector.extract_strided_slice %5 {offsets = [0, 0], sizes = [8, 128], strides = [1, 1]} : vector<64x128xf32> to vector<8x128xf32>
    %cst_11 = arith.constant dense<0.000000e+00> : vector<8x128xf32>
    %11 = tpu.matmul %8, %6, %cst_11 {dimension_numbers = #tpu.dot_dimension_numbers<[1], [0], [0], [1], [0, 0, 1, 1], [], []>} : vector<8x32xf32>, vector<32x128xf32>, vector<8x128xf32> -> vector<8x128xf32>
    %12 = arith.addf %10, %11 : vector<8x128xf32>
    %13 = arith.negf %12 : vector<8x128xf32>
    %14 = math.exp %13 : vector<8x128xf32>
    %cst_12 = arith.constant 1.000000e+00 : f32
    %15 = vector.broadcast %cst_12 : f32 to vector<8x128xf32>
    %16 = arith.addf %15, %14 : vector<8x128xf32>
    %17 = arith.divf %15, %16 : vector<8x128xf32>
    %18 = math.tanh %12 : vector<8x128xf32>
    %19 = vector.extract_strided_slice %17 {offsets = [0, 0], sizes = [8, 32], strides = [1, 1]} : vector<8x128xf32> to vector<8x32xf32>
    %20 = vector.extract_strided_slice %17 {offsets = [0, 32], sizes = [8, 32], strides = [1, 1]} : vector<8x128xf32> to vector<8x32xf32>
    %21 = vector.extract_strided_slice %18 {offsets = [0, 64], sizes = [8, 32], strides = [1, 1]} : vector<8x128xf32> to vector<8x32xf32>
    %22 = vector.extract_strided_slice %17 {offsets = [0, 96], sizes = [8, 32], strides = [1, 1]} : vector<8x128xf32> to vector<8x32xf32>
    %23 = arith.mulf %20, %9 : vector<8x32xf32>
    %24 = arith.mulf %19, %21 : vector<8x32xf32>
    %25 = arith.addf %23, %24 : vector<8x32xf32>
    %26 = math.tanh %25 : vector<8x32xf32>
    %27 = arith.mulf %22, %26 : vector<8x32xf32>
    %c0_i32 = arith.constant 0 : i32
    %28 = vector.broadcast %c0_i32 : i32 to vector<8x1xi32>
    %29 = arith.cmpi sgt, %7, %28 : vector<8x1xi32>
    %30 = vector.shape_cast %29 : vector<8x1xi1> to vector<8x1xi1>
    %31 = vector.broadcast %30 : vector<8x1xi1> to vector<8x32xi1>
    %32 = arith.select %31, %27, %8 : vector<8x32xi1>, vector<8x32xf32>
    %33 = vector.shape_cast %29 : vector<8x1xi1> to vector<8x1xi1>
    %34 = vector.broadcast %33 : vector<8x1xi1> to vector<8x32xi1>
    %35 = arith.select %34, %25, %9 : vector<8x32xi1>, vector<8x32xf32>
    %36 = vector.extract_strided_slice %5 {offsets = [8, 0], sizes = [8, 128], strides = [1, 1]} : vector<64x128xf32> to vector<8x128xf32>
    %cst_13 = arith.constant dense<0.000000e+00> : vector<8x128xf32>
    %37 = tpu.matmul %32, %6, %cst_13 {dimension_numbers = #tpu.dot_dimension_numbers<[1], [0], [0], [1], [0, 0, 1, 1], [], []>} : vector<8x32xf32>, vector<32x128xf32>, vector<8x128xf32> -> vector<8x128xf32>
    %38 = arith.addf %36, %37 : vector<8x128xf32>
    %39 = arith.negf %38 : vector<8x128xf32>
    %40 = math.exp %39 : vector<8x128xf32>
    %cst_14 = arith.constant 1.000000e+00 : f32
    %41 = vector.broadcast %cst_14 : f32 to vector<8x128xf32>
    %42 = arith.addf %41, %40 : vector<8x128xf32>
    %43 = arith.divf %41, %42 : vector<8x128xf32>
    %44 = math.tanh %38 : vector<8x128xf32>
    %45 = vector.extract_strided_slice %43 {offsets = [0, 0], sizes = [8, 32], strides = [1, 1]} : vector<8x128xf32> to vector<8x32xf32>
    %46 = vector.extract_strided_slice %43 {offsets = [0, 32], sizes = [8, 32], strides = [1, 1]} : vector<8x128xf32> to vector<8x32xf32>
    %47 = vector.extract_strided_slice %44 {offsets = [0, 64], sizes = [8, 32], strides = [1, 1]} : vector<8x128xf32> to vector<8x32xf32>
    %48 = vector.extract_strided_slice %43 {offsets = [0, 96], sizes = [8, 32], strides = [1, 1]} : vector<8x128xf32> to vector<8x32xf32>
    %49 = arith.mulf %46, %35 : vector<8x32xf32>
    %50 = arith.mulf %45, %47 : vector<8x32xf32>
    %51 = arith.addf %49, %50 : vector<8x32xf32>
    %52 = math.tanh %51 : vector<8x32xf32>
    %53 = arith.mulf %48, %52 : vector<8x32xf32>
    %c1_i32 = arith.constant 1 : i32
    %54 = vector.broadcast %c1_i32 : i32 to vector<8x1xi32>
    %55 = arith.cmpi sgt, %7, %54 : vector<8x1xi32>
    %56 = vector.shape_cast %55 : vector<8x1xi1> to vector<8x1xi1>
    %57 = vector.broadcast %56 : vector<8x1xi1> to vector<8x32xi1>
    %58 = arith.select %57, %53, %32 : vector<8x32xi1>, vector<8x32xf32>
    %59 = vector.shape_cast %55 : vector<8x1xi1> to vector<8x1xi1>
    %60 = vector.broadcast %59 : vector<8x1xi1> to vector<8x32xi1>
    %61 = arith.select %60, %51, %35 : vector<8x32xi1>, vector<8x32xf32>
    %62 = vector.extract_strided_slice %5 {offsets = [16, 0], sizes = [8, 128], strides = [1, 1]} : vector<64x128xf32> to vector<8x128xf32>
    %cst_15 = arith.constant dense<0.000000e+00> : vector<8x128xf32>
    %63 = tpu.matmul %58, %6, %cst_15 {dimension_numbers = #tpu.dot_dimension_numbers<[1], [0], [0], [1], [0, 0, 1, 1], [], []>} : vector<8x32xf32>, vector<32x128xf32>, vector<8x128xf32> -> vector<8x128xf32>
    %64 = arith.addf %62, %63 : vector<8x128xf32>
    %65 = arith.negf %64 : vector<8x128xf32>
    %66 = math.exp %65 : vector<8x128xf32>
    %cst_16 = arith.constant 1.000000e+00 : f32
    %67 = vector.broadcast %cst_16 : f32 to vector<8x128xf32>
    %68 = arith.addf %67, %66 : vector<8x128xf32>
    %69 = arith.divf %67, %68 : vector<8x128xf32>
    %70 = math.tanh %64 : vector<8x128xf32>
    %71 = vector.extract_strided_slice %69 {offsets = [0, 0], sizes = [8, 32], strides = [1, 1]} : vector<8x128xf32> to vector<8x32xf32>
    %72 = vector.extract_strided_slice %69 {offsets = [0, 32], sizes = [8, 32], strides = [1, 1]} : vector<8x128xf32> to vector<8x32xf32>
    %73 = vector.extract_strided_slice %70 {offsets = [0, 64], sizes = [8, 32], strides = [1, 1]} : vector<8x128xf32> to vector<8x32xf32>
    %74 = vector.extract_strided_slice %69 {offsets = [0, 96], sizes = [8, 32], strides = [1, 1]} : vector<8x128xf32> to vector<8x32xf32>
    %75 = arith.mulf %72, %61 : vector<8x32xf32>
    %76 = arith.mulf %71, %73 : vector<8x32xf32>
    %77 = arith.addf %75, %76 : vector<8x32xf32>
    %78 = math.tanh %77 : vector<8x32xf32>
    %79 = arith.mulf %74, %78 : vector<8x32xf32>
    %c2_i32 = arith.constant 2 : i32
    %80 = vector.broadcast %c2_i32 : i32 to vector<8x1xi32>
    %81 = arith.cmpi sgt, %7, %80 : vector<8x1xi32>
    %82 = vector.shape_cast %81 : vector<8x1xi1> to vector<8x1xi1>
    %83 = vector.broadcast %82 : vector<8x1xi1> to vector<8x32xi1>
    %84 = arith.select %83, %79, %58 : vector<8x32xi1>, vector<8x32xf32>
    %85 = vector.shape_cast %81 : vector<8x1xi1> to vector<8x1xi1>
    %86 = vector.broadcast %85 : vector<8x1xi1> to vector<8x32xi1>
    %87 = arith.select %86, %77, %61 : vector<8x32xi1>, vector<8x32xf32>
    %88 = vector.extract_strided_slice %5 {offsets = [24, 0], sizes = [8, 128], strides = [1, 1]} : vector<64x128xf32> to vector<8x128xf32>
    %cst_17 = arith.constant dense<0.000000e+00> : vector<8x128xf32>
    %89 = tpu.matmul %84, %6, %cst_17 {dimension_numbers = #tpu.dot_dimension_numbers<[1], [0], [0], [1], [0, 0, 1, 1], [], []>} : vector<8x32xf32>, vector<32x128xf32>, vector<8x128xf32> -> vector<8x128xf32>
    %90 = arith.addf %88, %89 : vector<8x128xf32>
    %91 = arith.negf %90 : vector<8x128xf32>
    %92 = math.exp %91 : vector<8x128xf32>
    %cst_18 = arith.constant 1.000000e+00 : f32
    %93 = vector.broadcast %cst_18 : f32 to vector<8x128xf32>
    %94 = arith.addf %93, %92 : vector<8x128xf32>
    %95 = arith.divf %93, %94 : vector<8x128xf32>
    %96 = math.tanh %90 : vector<8x128xf32>
    %97 = vector.extract_strided_slice %95 {offsets = [0, 0], sizes = [8, 32], strides = [1, 1]} : vector<8x128xf32> to vector<8x32xf32>
    %98 = vector.extract_strided_slice %95 {offsets = [0, 32], sizes = [8, 32], strides = [1, 1]} : vector<8x128xf32> to vector<8x32xf32>
    %99 = vector.extract_strided_slice %96 {offsets = [0, 64], sizes = [8, 32], strides = [1, 1]} : vector<8x128xf32> to vector<8x32xf32>
    %100 = vector.extract_strided_slice %95 {offsets = [0, 96], sizes = [8, 32], strides = [1, 1]} : vector<8x128xf32> to vector<8x32xf32>
    %101 = arith.mulf %98, %87 : vector<8x32xf32>
    %102 = arith.mulf %97, %99 : vector<8x32xf32>
    %103 = arith.addf %101, %102 : vector<8x32xf32>
    %104 = math.tanh %103 : vector<8x32xf32>
    %105 = arith.mulf %100, %104 : vector<8x32xf32>
    %c3_i32 = arith.constant 3 : i32
    %106 = vector.broadcast %c3_i32 : i32 to vector<8x1xi32>
    %107 = arith.cmpi sgt, %7, %106 : vector<8x1xi32>
    %108 = vector.shape_cast %107 : vector<8x1xi1> to vector<8x1xi1>
    %109 = vector.broadcast %108 : vector<8x1xi1> to vector<8x32xi1>
    %110 = arith.select %109, %105, %84 : vector<8x32xi1>, vector<8x32xf32>
    %111 = vector.shape_cast %107 : vector<8x1xi1> to vector<8x1xi1>
    %112 = vector.broadcast %111 : vector<8x1xi1> to vector<8x32xi1>
    %113 = arith.select %112, %103, %87 : vector<8x32xi1>, vector<8x32xf32>
    %114 = vector.extract_strided_slice %5 {offsets = [32, 0], sizes = [8, 128], strides = [1, 1]} : vector<64x128xf32> to vector<8x128xf32>
    %cst_19 = arith.constant dense<0.000000e+00> : vector<8x128xf32>
    %115 = tpu.matmul %110, %6, %cst_19 {dimension_numbers = #tpu.dot_dimension_numbers<[1], [0], [0], [1], [0, 0, 1, 1], [], []>} : vector<8x32xf32>, vector<32x128xf32>, vector<8x128xf32> -> vector<8x128xf32>
    %116 = arith.addf %114, %115 : vector<8x128xf32>
    %117 = arith.negf %116 : vector<8x128xf32>
    %118 = math.exp %117 : vector<8x128xf32>
    %cst_20 = arith.constant 1.000000e+00 : f32
    %119 = vector.broadcast %cst_20 : f32 to vector<8x128xf32>
    %120 = arith.addf %119, %118 : vector<8x128xf32>
    %121 = arith.divf %119, %120 : vector<8x128xf32>
    %122 = math.tanh %116 : vector<8x128xf32>
    %123 = vector.extract_strided_slice %121 {offsets = [0, 0], sizes = [8, 32], strides = [1, 1]} : vector<8x128xf32> to vector<8x32xf32>
    %124 = vector.extract_strided_slice %121 {offsets = [0, 32], sizes = [8, 32], strides = [1, 1]} : vector<8x128xf32> to vector<8x32xf32>
    %125 = vector.extract_strided_slice %122 {offsets = [0, 64], sizes = [8, 32], strides = [1, 1]} : vector<8x128xf32> to vector<8x32xf32>
    %126 = vector.extract_strided_slice %121 {offsets = [0, 96], sizes = [8, 32], strides = [1, 1]} : vector<8x128xf32> to vector<8x32xf32>
    %127 = arith.mulf %124, %113 : vector<8x32xf32>
    %128 = arith.mulf %123, %125 : vector<8x32xf32>
    %129 = arith.addf %127, %128 : vector<8x32xf32>
    %130 = math.tanh %129 : vector<8x32xf32>
    %131 = arith.mulf %126, %130 : vector<8x32xf32>
    %c4_i32 = arith.constant 4 : i32
    %132 = vector.broadcast %c4_i32 : i32 to vector<8x1xi32>
    %133 = arith.cmpi sgt, %7, %132 : vector<8x1xi32>
    %134 = vector.shape_cast %133 : vector<8x1xi1> to vector<8x1xi1>
    %135 = vector.broadcast %134 : vector<8x1xi1> to vector<8x32xi1>
    %136 = arith.select %135, %131, %110 : vector<8x32xi1>, vector<8x32xf32>
    %137 = vector.shape_cast %133 : vector<8x1xi1> to vector<8x1xi1>
    %138 = vector.broadcast %137 : vector<8x1xi1> to vector<8x32xi1>
    %139 = arith.select %138, %129, %113 : vector<8x32xi1>, vector<8x32xf32>
    %140 = vector.extract_strided_slice %5 {offsets = [40, 0], sizes = [8, 128], strides = [1, 1]} : vector<64x128xf32> to vector<8x128xf32>
    %cst_21 = arith.constant dense<0.000000e+00> : vector<8x128xf32>
    %141 = tpu.matmul %136, %6, %cst_21 {dimension_numbers = #tpu.dot_dimension_numbers<[1], [0], [0], [1], [0, 0, 1, 1], [], []>} : vector<8x32xf32>, vector<32x128xf32>, vector<8x128xf32> -> vector<8x128xf32>
    %142 = arith.addf %140, %141 : vector<8x128xf32>
    %143 = arith.negf %142 : vector<8x128xf32>
    %144 = math.exp %143 : vector<8x128xf32>
    %cst_22 = arith.constant 1.000000e+00 : f32
    %145 = vector.broadcast %cst_22 : f32 to vector<8x128xf32>
    %146 = arith.addf %145, %144 : vector<8x128xf32>
    %147 = arith.divf %145, %146 : vector<8x128xf32>
    %148 = math.tanh %142 : vector<8x128xf32>
    %149 = vector.extract_strided_slice %147 {offsets = [0, 0], sizes = [8, 32], strides = [1, 1]} : vector<8x128xf32> to vector<8x32xf32>
    %150 = vector.extract_strided_slice %147 {offsets = [0, 32], sizes = [8, 32], strides = [1, 1]} : vector<8x128xf32> to vector<8x32xf32>
    %151 = vector.extract_strided_slice %148 {offsets = [0, 64], sizes = [8, 32], strides = [1, 1]} : vector<8x128xf32> to vector<8x32xf32>
    %152 = vector.extract_strided_slice %147 {offsets = [0, 96], sizes = [8, 32], strides = [1, 1]} : vector<8x128xf32> to vector<8x32xf32>
    %153 = arith.mulf %150, %139 : vector<8x32xf32>
    %154 = arith.mulf %149, %151 : vector<8x32xf32>
    %155 = arith.addf %153, %154 : vector<8x32xf32>
    %156 = math.tanh %155 : vector<8x32xf32>
    %157 = arith.mulf %152, %156 : vector<8x32xf32>
    %c5_i32 = arith.constant 5 : i32
    %158 = vector.broadcast %c5_i32 : i32 to vector<8x1xi32>
    %159 = arith.cmpi sgt, %7, %158 : vector<8x1xi32>
    %160 = vector.shape_cast %159 : vector<8x1xi1> to vector<8x1xi1>
    %161 = vector.broadcast %160 : vector<8x1xi1> to vector<8x32xi1>
    %162 = arith.select %161, %157, %136 : vector<8x32xi1>, vector<8x32xf32>
    %163 = vector.shape_cast %159 : vector<8x1xi1> to vector<8x1xi1>
    %164 = vector.broadcast %163 : vector<8x1xi1> to vector<8x32xi1>
    %165 = arith.select %164, %155, %139 : vector<8x32xi1>, vector<8x32xf32>
    %166 = vector.extract_strided_slice %5 {offsets = [48, 0], sizes = [8, 128], strides = [1, 1]} : vector<64x128xf32> to vector<8x128xf32>
    %cst_23 = arith.constant dense<0.000000e+00> : vector<8x128xf32>
    %167 = tpu.matmul %162, %6, %cst_23 {dimension_numbers = #tpu.dot_dimension_numbers<[1], [0], [0], [1], [0, 0, 1, 1], [], []>} : vector<8x32xf32>, vector<32x128xf32>, vector<8x128xf32> -> vector<8x128xf32>
    %168 = arith.addf %166, %167 : vector<8x128xf32>
    %169 = arith.negf %168 : vector<8x128xf32>
    %170 = math.exp %169 : vector<8x128xf32>
    %cst_24 = arith.constant 1.000000e+00 : f32
    %171 = vector.broadcast %cst_24 : f32 to vector<8x128xf32>
    %172 = arith.addf %171, %170 : vector<8x128xf32>
    %173 = arith.divf %171, %172 : vector<8x128xf32>
    %174 = math.tanh %168 : vector<8x128xf32>
    %175 = vector.extract_strided_slice %173 {offsets = [0, 0], sizes = [8, 32], strides = [1, 1]} : vector<8x128xf32> to vector<8x32xf32>
    %176 = vector.extract_strided_slice %173 {offsets = [0, 32], sizes = [8, 32], strides = [1, 1]} : vector<8x128xf32> to vector<8x32xf32>
    %177 = vector.extract_strided_slice %174 {offsets = [0, 64], sizes = [8, 32], strides = [1, 1]} : vector<8x128xf32> to vector<8x32xf32>
    %178 = vector.extract_strided_slice %173 {offsets = [0, 96], sizes = [8, 32], strides = [1, 1]} : vector<8x128xf32> to vector<8x32xf32>
    %179 = arith.mulf %176, %165 : vector<8x32xf32>
    %180 = arith.mulf %175, %177 : vector<8x32xf32>
    %181 = arith.addf %179, %180 : vector<8x32xf32>
    %182 = math.tanh %181 : vector<8x32xf32>
    %183 = arith.mulf %178, %182 : vector<8x32xf32>
    %c6_i32 = arith.constant 6 : i32
    %184 = vector.broadcast %c6_i32 : i32 to vector<8x1xi32>
    %185 = arith.cmpi sgt, %7, %184 : vector<8x1xi32>
    %186 = vector.shape_cast %185 : vector<8x1xi1> to vector<8x1xi1>
    %187 = vector.broadcast %186 : vector<8x1xi1> to vector<8x32xi1>
    %188 = arith.select %187, %183, %162 : vector<8x32xi1>, vector<8x32xf32>
    %189 = vector.shape_cast %185 : vector<8x1xi1> to vector<8x1xi1>
    %190 = vector.broadcast %189 : vector<8x1xi1> to vector<8x32xi1>
    %191 = arith.select %190, %181, %165 : vector<8x32xi1>, vector<8x32xf32>
    %192 = vector.extract_strided_slice %5 {offsets = [56, 0], sizes = [8, 128], strides = [1, 1]} : vector<64x128xf32> to vector<8x128xf32>
    %cst_25 = arith.constant dense<0.000000e+00> : vector<8x128xf32>
    %193 = tpu.matmul %188, %6, %cst_25 {dimension_numbers = #tpu.dot_dimension_numbers<[1], [0], [0], [1], [0, 0, 1, 1], [], []>} : vector<8x32xf32>, vector<32x128xf32>, vector<8x128xf32> -> vector<8x128xf32>
    %194 = arith.addf %192, %193 : vector<8x128xf32>
    %195 = arith.negf %194 : vector<8x128xf32>
    %196 = math.exp %195 : vector<8x128xf32>
    %cst_26 = arith.constant 1.000000e+00 : f32
    %197 = vector.broadcast %cst_26 : f32 to vector<8x128xf32>
    %198 = arith.addf %197, %196 : vector<8x128xf32>
    %199 = arith.divf %197, %198 : vector<8x128xf32>
    %200 = math.tanh %194 : vector<8x128xf32>
    %201 = vector.extract_strided_slice %199 {offsets = [0, 0], sizes = [8, 32], strides = [1, 1]} : vector<8x128xf32> to vector<8x32xf32>
    %202 = vector.extract_strided_slice %199 {offsets = [0, 32], sizes = [8, 32], strides = [1, 1]} : vector<8x128xf32> to vector<8x32xf32>
    %203 = vector.extract_strided_slice %200 {offsets = [0, 64], sizes = [8, 32], strides = [1, 1]} : vector<8x128xf32> to vector<8x32xf32>
    %204 = vector.extract_strided_slice %199 {offsets = [0, 96], sizes = [8, 32], strides = [1, 1]} : vector<8x128xf32> to vector<8x32xf32>
    %205 = arith.mulf %202, %191 : vector<8x32xf32>
    %206 = arith.mulf %201, %203 : vector<8x32xf32>
    %207 = arith.addf %205, %206 : vector<8x32xf32>
    %208 = math.tanh %207 : vector<8x32xf32>
    %209 = arith.mulf %204, %208 : vector<8x32xf32>
    %c7_i32 = arith.constant 7 : i32
    %210 = vector.broadcast %c7_i32 : i32 to vector<8x1xi32>
    %211 = arith.cmpi sgt, %7, %210 : vector<8x1xi32>
    %212 = vector.shape_cast %211 : vector<8x1xi1> to vector<8x1xi1>
    %213 = vector.broadcast %212 : vector<8x1xi1> to vector<8x32xi1>
    %214 = arith.select %213, %209, %188 : vector<8x32xi1>, vector<8x32xf32>
    %c0_27 = arith.constant 0 : index
    %c0_28 = arith.constant 0 : index
    %215 = vector.load %arg5[%c0_27, %c0_28] : memref<32x128xf32, #tpu.memory_space<vmem>>, vector<32x128xf32>
    %cst_29 = arith.constant dense<0.000000e+00> : vector<8x128xf32>
    %216 = tpu.matmul %214, %215, %cst_29 {dimension_numbers = #tpu.dot_dimension_numbers<[1], [0], [0], [1], [0, 0, 1, 1], [], []>} : vector<8x32xf32>, vector<32x128xf32>, vector<8x128xf32> -> vector<8x128xf32>
    %c0_30 = arith.constant 0 : index
    %c0_31 = arith.constant 0 : index
    %217 = vector.load %arg6[%c0_30, %c0_31] : memref<1x128xf32, #tpu.memory_space<vmem>>, vector<1x128xf32>
    %218 = vector.broadcast %217 : vector<1x128xf32> to vector<8x128xf32>
    %219 = arith.addf %216, %218 : vector<8x128xf32>
    %c0_32 = arith.constant 0 : index
    %c0_33 = arith.constant 0 : index
    %220 = vector.load %arg7[%c0_32, %c0_33] : memref<8x128xf32, #tpu.memory_space<vmem>>, vector<8x128xf32>
    tpu.vector_store %arg7[%c0_32, %c0_33], %219 {strides = array<i32>} : memref<8x128xf32, #tpu.memory_space<vmem>>, vector<8x128xf32>,
    return
  }
}

</mosaic_0001>

<llo_original>
// kernel: tpu_custom_call.1
$region0: #{tpu_custom_call.1}
  #allocation0 [shape = 'u32[]', space=smem, size = 0x4, offset = 0x4, fixed_abs, tag = 'smem constant byte address 0x4 - core index']
  #allocation1 [shape = 'u32[144,128]{1,0:T(1,128)}', space=vmem, size = 0x12000, scoped, tag = 'internal scratch']
  %s0 = inlined_call_operand.vmem [shape: s32[8,1], index: 0, kind: input, shape index: {}]
  %s1 = inlined_call_operand.vmem [shape: f32[64,32], index: 1, kind: input, shape index: {}]
  %s2 = inlined_call_operand.vmem [shape: f32[32,128], index: 2, kind: input, shape index: {}]
  %s3 = inlined_call_operand.vmem [shape: f32[32,128], index: 3, kind: input, shape index: {}]
  %s4 = inlined_call_operand.vmem [shape: f32[1,128], index: 4, kind: input, shape index: {}]
  %s5 = inlined_call_operand.vmem [shape: f32[32,128], index: 5, kind: input, shape index: {}]
  %s6 = inlined_call_operand.vmem [shape: f32[1,128], index: 6, kind: input, shape index: {}]
  %s7 = inlined_call_operand.hbm [shape: f32[8,128], index: 7, kind: output, shape index: {}]
  %s8 = sld [smem:[#allocation0]]
  $region38: #{tpu_custom_call.1} parent=0
    _
  %s10 = ssub.s32 1, %s8
  %s11 = scalar_select 0, %s10, %s8
  $region1: #{tpu_custom_call.1} parent=0
    #allocation2 [shape = 'u8[4096]{0}', space=vmem, size = 0x1000, scoped, tag = 'output window, operand 0, single buffered']
    #allocation3 [shape = 's32[1]{0}', space=sflag, size = 0x4, scoped, tag = 'scoped memory for tpu_custom_call.1']
    %12 = vsyncpa [#allocation3], 0
    // Predicated region
    $region2: #{tpu_custom_call.1} parent=1 // pred_check
      _
    $region3: #{tpu_custom_call.1} parent=1 // pred_check_branch
      %14 = sbr.rel (0) target = $region5
    $region4: #{tpu_custom_call.1} parent=1 // pred_region
      _
    $region5: #{tpu_custom_call.1} parent=1 // pred_fallthru
      _
    // Predicated region
    $region6: #{tpu_custom_call.1} parent=1 // pred_check
      _
    $region7: #{tpu_custom_call.1} parent=1 // pred_check_branch
      %16 = sbr.rel (0) target = $region9
    $region8: #{tpu_custom_call.1} parent=1 // pred_region
      _
    $region9: #{tpu_custom_call.1} parent=1 // pred_fallthru
      _
    // Predicated region
    $region10: #{tpu_custom_call.1} parent=1 // pred_check
      _
    $region11: #{tpu_custom_call.1} parent=1 // pred_check_branch
      %18 = sbr.rel (0) target = $region13
    $region12: #{tpu_custom_call.1} parent=1 // pred_region
      _
    $region13: #{tpu_custom_call.1} parent=1 // pred_fallthru
      _
    // Predicated region
    $region14: #{tpu_custom_call.1} parent=1 // pred_check
      _
    $region15: #{tpu_custom_call.1} parent=1 // pred_check_branch
      %20 = sbr.rel (0) target = $region17
    $region16: #{tpu_custom_call.1} parent=1 // pred_region
      _
    $region17: #{tpu_custom_call.1} parent=1 // pred_fallthru
      _
    // Predicated region
    $region18: #{tpu_custom_call.1} parent=1 // pred_check
      _
    $region19: #{tpu_custom_call.1} parent=1 // pred_check_branch
      %22 = sbr.rel (0) target = $region21
    $region20: #{tpu_custom_call.1} parent=1 // pred_region
      _
    $region21: #{tpu_custom_call.1} parent=1 // pred_fallthru
      _
    // Predicated region
    $region22: #{tpu_custom_call.1} parent=1 // pred_check
      _
    $region23: #{tpu_custom_call.1} parent=1 // pred_check_branch
      %24 = sbr.rel (0) target = $region25
    $region24: #{tpu_custom_call.1} parent=1 // pred_region
      _
    $region25: #{tpu_custom_call.1} parent=1 // pred_fallthru
      _
    // Predicated region
    $region26: #{tpu_custom_call.1} parent=1 // pred_check
      _
    $region27: #{tpu_custom_call.1} parent=1 // pred_check_branch
      %26 = sbr.rel (0) target = $region29
    $region28: #{tpu_custom_call.1} parent=1 // pred_region
      _
    $region29: #{tpu_custom_call.1} parent=1 // pred_fallthru
      _
    %v27 = vld [vmem:[%s1] sm:$0xff]
    %v28 = vld [vmem:[%s1 + $0x8] sm:$0xff]
    %v29 = vld [vmem:[%s1 + $0x10] sm:$0xff]
    %v30 = vld [vmem:[%s1 + $0x18] sm:$0xff]
    %v31 = vld [vmem:[%s1 + $0x20] sm:$0xff]
    %v32 = vld [vmem:[%s1 + $0x28] sm:$0xff]
    %v33 = vld [vmem:[%s1 + $0x30] sm:$0xff]
    %v34 = vld [vmem:[%s1 + $0x38] sm:$0xff]
    %v35 = vld [vmem:[%s2] sm:$0xff]
    %v36 = vld [vmem:[%s2 + $0x8] sm:$0xff]
    %v37 = vld [vmem:[%s2 + $0x10] sm:$0xff]
    %v38 = vld [vmem:[%s2 + $0x18] sm:$0xff]
    %v39 = vld [vmem:[%s4] sm:$0x1]
    %v41 = vlaneseq
    %v42 = vshrl.u32 %v41, 7
    %v43 = vsub.s32 0, %v42
    %v44 = vrot.slane %v39, %v43
    %vm46 = vcmask 261120
    %v48 = vsel %vm46, %v27, 0
    %v51 = vsel %vm46, %v28, 0
    %v54 = vsel %vm46, %v29, 0
    %v57 = vsel %vm46, %v30, 0
    %v60 = vsel %vm46, %v31, 0
    %v63 = vsel %vm46, %v32, 0
    %v66 = vsel %vm46, %v33, 0
    %v69 = vsel %vm46, %v34, 0
    %71 = vmatprep.subr.mxu0 0.0
    %72 = vmatpush1.msra.mxu0 %v35
    %73 = vmatprep.subr.mxu0 0.0
    %74 = vmatpush1.msra.mxu0 %v36
    %75 = vmatprep.subr.mxu0 0.0
    %76 = vmatpush1.msra.mxu0 %v37
    %77 = vmatprep.subr.mxu0 0.0
    %78 = vmatpush1.msra.mxu0 %v38
    %79 = vmatprep.subr.mxu0 0.0
    %80 = vmatpush1.msra.mxu0 0.0
    %81 = vmatprep.subr.mxu0 0.0
    %82 = vmatpush1.msra.mxu0 0.0
    %83 = vmatprep.subr.mxu0 0.0
    %84 = vmatpush1.msra.mxu0 0.0
    %85 = vmatprep.subr.mxu0 0.0
    %86 = vmatpush1.msra.mxu0 0.0
    %87 = vmatprep.subr.mxu0 0.0
    %88 = vmatpush1.msra.mxu0 0.0
    %89 = vmatprep.subr.mxu0 0.0
    %90 = vmatpush1.msra.mxu0 0.0
    %91 = vmatprep.subr.mxu0 0.0
    %92 = vmatpush1.msra.mxu0 0.0
    %93 = vmatprep.subr.mxu0 0.0
    %94 = vmatpush1.msra.mxu0 0.0
    %95 = vmatprep.subr.mxu0 0.0
    %96 = vmatpush1.msra.mxu0 0.0
    %97 = vmatprep.subr.mxu0 0.0
    %98 = vmatpush1.msra.mxu0 0.0
    %99 = vmatprep.subr.mxu0 0.0
    %100 = vmatpush1.msra.mxu0 0.0
    %101 = vmatprep.subr.mxu0 0.0
    %102 = vmatpush1.msra.mxu0 0.0
    %103 = vmatprep.subr.mxu0 0.0
    %104 = vmatpush1.msra.mxu0 0.0
    %105 = vmatprep.subr.mxu0 0.0
    %106 = vmatpush1.msra.mxu0 0.0
    %107 = vmatprep.subr.mxu0 0.0
    %108 = vmatpush1.msra.mxu0 0.0
    %109 = vmatprep.subr.mxu0 0.0
    %110 = vmatpush1.msra.mxu0 0.0
    %111 = vmatprep.subr.mxu0 0.0
    %112 = vmatpush1.msra.mxu0 0.0
    %113 = vmatprep.subr.mxu0 0.0
    %114 = vmatpush1.msra.mxu0 0.0
    %115 = vmatprep.subr.mxu0 0.0
    %116 = vmatpush1.msra.mxu0 0.0
    %117 = vmatprep.subr.mxu0 0.0
    %118 = vmatpush1.msra.mxu0 0.0
    %119 = vmatprep.subr.mxu0 0.0
    %120 = vmatpush1.msra.mxu0 0.0
    %121 = vmatprep.subr.mxu0 0.0
    %122 = vmatpush1.msra.mxu0 0.0
    %123 = vmatprep.subr.mxu0 0.0
    %124 = vmatpush1.msra.mxu0 0.0
    %125 = vmatprep.subr.mxu0 0.0
    %126 = vmatpush1.msra.mxu0 0.0
    %127 = vmatprep.subr.mxu0 0.0
    %128 = vmatpush1.msra.mxu0 0.0
    %129 = vmatprep.subr.mxu0 0.0
    %130 = vmatpush1.msra.mxu0 0.0
    %131 = vmatprep.subr.mxu0 0.0
    %132 = vmatpush1.msra.mxu0 0.0
    %133 = vmatprep.subr.mxu0 0.0
    %134 = vmatpush1.msra.mxu0 0.0
    %135 = vmatprep.mubr.f32.mxu0 0.0
    %136 = vmatmul.mubr.f32.gmra.mrb[0].mxu0 %v48
    %v137 = vpop.f32.mrb[0].mxu0
    %v138 = vadd.f32 %v44, %v137
    %v139 = vpop.f32.mrb[0].mxu0
    %140 = vmatprep.mubr.f32.mxu0 0.0
    %141 = vmatmul.mubr.f32.gmra.mrb[0].mxu0 %v51
    %v142 = vpop.f32.mrb[0].mxu0
    %v143 = vadd.f32 %v44, %v142
    %v144 = vpop.f32.mrb[0].mxu0
    %145 = vmatprep.mubr.f32.mxu0 0.0
    %146 = vmatmul.mubr.f32.gmra.mrb[0].mxu0 %v54
    %v147 = vpop.f32.mrb[0].mxu0
    %v148 = vadd.f32 %v44, %v147
    %v149 = vpop.f32.mrb[0].mxu0
    %150 = vmatprep.mubr.f32.mxu0 0.0
    %151 = vmatmul.mubr.f32.gmra.mrb[0].mxu0 %v57
    %v152 = vpop.f32.mrb[0].mxu0
    %v153 = vadd.f32 %v44, %v152
    %v154 = vpop.f32.mrb[0].mxu0
    %155 = vmatprep.mubr.f32.mxu0 0.0
    %156 = vmatmul.mubr.f32.gmra.mrb[0].mxu0 %v60
    %v157 = vpop.f32.mrb[0].mxu0
    %v158 = vadd.f32 %v44, %v157
    %v159 = vpop.f32.mrb[0].mxu0
    %160 = vmatprep.mubr.f32.mxu0 0.0
    %161 = vmatmul.mubr.f32.gmra.mrb[0].mxu0 %v63
    %v162 = vpop.f32.mrb[0].mxu0
    %v163 = vadd.f32 %v44, %v162
    %v164 = vpop.f32.mrb[0].mxu0
    %165 = vmatprep.mubr.f32.mxu0 0.0
    %166 = vmatmul.mubr.f32.gmra.mrb[0].mxu0 %v66
    %v167 = vpop.f32.mrb[0].mxu0
    %v168 = vadd.f32 %v44, %v167
    %v169 = vpop.f32.mrb[0].mxu0
    %170 = vmatprep.mubr.f32.mxu0 0.0
    %171 = vmatmul.mubr.f32.gmra.mrb[0].mxu0 %v69
    %v172 = vpop.f32.mrb[0].mxu0
    %v173 = vadd.f32 %v44, %v172
    %v174 = vpop.f32.mrb[0].mxu0
    %175 = vdwg.mxu0
    %v176 = vld [vmem:[%s3] sm:$0xff]
    %v177 = vld [vmem:[%s3 + $0x8] sm:$0xff]
    %v178 = vld [vmem:[%s3 + $0x10] sm:$0xff]
    %v179 = vld [vmem:[%s3 + $0x18] sm:$0xff]
    %v180 = vld [vmem:[%s0] sm:$0xff]
    %v182 = vsel %vm46, 0.0, 0
    %184 = vmatprep.subr.mxu0 0.0
    %185 = vmatpush1.msra.mxu0 %v176
    %186 = vmatprep.subr.mxu0 0.0
    %187 = vmatpush1.msra.mxu0 %v177
    %188 = vmatprep.subr.mxu0 0.0
    %189 = vmatpush1.msra.mxu0 %v178
    %190 = vmatprep.subr.mxu0 0.0
    %191 = vmatpush1.msra.mxu0 %v179
    %192 = vmatprep.subr.mxu0 0.0
    %193 = vmatpush1.msra.mxu0 0.0
    %194 = vmatprep.subr.mxu0 0.0
    %195 = vmatpush1.msra.mxu0 0.0
    %196 = vmatprep.subr.mxu0 0.0
    %197 = vmatpush1.msra.mxu0 0.0
    %198 = vmatprep.subr.mxu0 0.0
    %199 = vmatpush1.msra.mxu0 0.0
    %200 = vmatprep.subr.mxu0 0.0
    %201 = vmatpush1.msra.mxu0 0.0
    %202 = vmatprep.subr.mxu0 0.0
    %203 = vmatpush1.msra.mxu0 0.0
    %204 = vmatprep.subr.mxu0 0.0
    %205 = vmatpush1.msra.mxu0 0.0
    %206 = vmatprep.subr.mxu0 0.0
    %207 = vmatpush1.msra.mxu0 0.0
    %208 = vmatprep.subr.mxu0 0.0
    %209 = vmatpush1.msra.mxu0 0.0
    %210 = vmatprep.subr.mxu0 0.0
    %211 = vmatpush1.msra.mxu0 0.0
    %212 = vmatprep.subr.mxu0 0.0
    %213 = vmatpush1.msra.mxu0 0.0
    %214 = vmatprep.subr.mxu0 0.0
    %215 = vmatpush1.msra.mxu0 0.0
    %216 = vmatprep.subr.mxu0 0.0
    %217 = vmatpush1.msra.mxu0 0.0
    %218 = vmatprep.subr.mxu0 0.0
    %219 = vmatpush1.msra.mxu0 0.0
    %220 = vmatprep.subr.mxu0 0.0
    %221 = vmatpush1.msra.mxu0 0.0
    %222 = vmatprep.subr.mxu0 0.0
    %223 = vmatpush1.msra.mxu0 0.0
    %224 = vmatprep.subr.mxu0 0.0
    %225 = vmatpush1.msra.mxu0 0.0
    %226 = vmatprep.subr.mxu0 0.0
    %227 = vmatpush1.msra.mxu0 0.0
    %228 = vmatprep.subr.mxu0 0.0
    %229 = vmatpush1.msra.mxu0 0.0
    %230 = vmatprep.subr.mxu0 0.0
    %231 = vmatpush1.msra.mxu0 0.0
    %232 = vmatprep.subr.mxu0 0.0
    %233 = vmatpush1.msra.mxu0 0.0
    %234 = vmatprep.subr.mxu0 0.0
    %235 = vmatpush1.msra.mxu0 0.0
    %236 = vmatprep.subr.mxu0 0.0
    %237 = vmatpush1.msra.mxu0 0.0
    %238 = vmatprep.subr.mxu0 0.0
    %239 = vmatpush1.msra.mxu0 0.0
    %240 = vmatprep.subr.mxu0 0.0
    %241 = vmatpush1.msra.mxu0 0.0
    %242 = vmatprep.subr.mxu0 0.0
    %243 = vmatpush1.msra.mxu0 0.0
    %244 = vmatprep.subr.mxu0 0.0
    %245 = vmatpush1.msra.mxu0 0.0
    %246 = vmatprep.subr.mxu0 0.0
    %247 = vmatpush1.msra.mxu0 0.0
    %248 = vmatprep.mubr.f32.mxu0 0.0
    %249 = vmatmul.mubr.f32.gmra.mrb[0].mxu0 %v182
    %v250 = vpop.f32.mrb[0].mxu0
    %v251 = vadd.f32 0.0, %v250
    %v252 = vpop.f32.mrb[0].mxu0
    %253 = vdwg.mxu0
    %v254 = vadd.f32 %v138, %v251
    %v255 = vxor.u32 %v254, 2147483648
    %v256 = vmul.f32 %v255, 1.442695
    %v257 = vpow.pop %v256
    %v258 = vadd.f32 %v257, 1.0
    %v259 = vrcp.pop %v258
    %v260 = vmul.f32 1.0, %v259
    %v261 = vtanh.pop %v254
    %v262 = vmul.f32 %v260, 0.0
    %264 = vrot.lane.b32.xlu0 %v261, 64
    %v265 = vpop.permute.xlu0 %264
    %v267 = vmul.f32 %v260, %v265
    %269 = vrot.lane.b32.xlu0 %v267, 32
    %v270 = vpop.permute.xlu0 %269
    %v272 = vadd.f32 %v262, %v270
    %v273 = vtanh.pop %v272
    %275 = vrot.lane.b32.xlu0 %v273, 64
    %v276 = vpop.permute.xlu0 %275
    %v278 = vmul.f32 %v260, %v276
    %vm279 = vcmp.gt.s32.totalorder %v180, 0
    %v280 = vsel %vm279, 1, 0
    %281 = vset.pattern.permute.xlu0 0
    %282 = vperm.xlu0 %281, %v280
    %v283 = vpop.permute.xlu0 %282
    %vm284 = vcmp.eq.s32.totalorder %v283, 1
    %v285 = vsel %vm284, %v278, 0.0
    %v286 = vsel %vm284, %v272, 0.0
    %288 = vrot.lane.b32.xlu0 %v285, 32
    %v289 = vpop.permute.xlu0 %288
    %v290 = vsel %vm46, %v289, 0
    %292 = vmatprep.subr.mxu0 0.0
    %293 = vmatpush1.msra.mxu0 %v176
    %294 = vmatprep.subr.mxu0 0.0
    %295 = vmatpush1.msra.mxu0 %v177
    %296 = vmatprep.subr.mxu0 0.0
    %297 = vmatpush1.msra.mxu0 %v178
    %298 = vmatprep.subr.mxu0 0.0
    %299 = vmatpush1.msra.mxu0 %v179
    %300 = vmatprep.subr.mxu0 0.0
    %301 = vmatpush1.msra.mxu0 0.0
    %302 = vmatprep.subr.mxu0 0.0
    %303 = vmatpush1.msra.mxu0 0.0
    %304 = vmatprep.subr.mxu0 0.0
    %305 = vmatpush1.msra.mxu0 0.0
    %306 = vmatprep.subr.mxu0 0.0
    %307 = vmatpush1.msra.mxu0 0.0
    %308 = vmatprep.subr.mxu0 0.0
    %309 = vmatpush1.msra.mxu0 0.0
    %310 = vmatprep.subr.mxu0 0.0
    %311 = vmatpush1.msra.mxu0 0.0
    %312 = vmatprep.subr.mxu0 0.0
    %313 = vmatpush1.msra.mxu0 0.0
    %314 = vmatprep.subr.mxu0 0.0
    %315 = vmatpush1.msra.mxu0 0.0
    %316 = vmatprep.subr.mxu0 0.0
    %317 = vmatpush1.msra.mxu0 0.0
    %318 = vmatprep.subr.mxu0 0.0
    %319 = vmatpush1.msra.mxu0 0.0
    %320 = vmatprep.subr.mxu0 0.0
    %321 = vmatpush1.msra.mxu0 0.0
    %322 = vmatprep.subr.mxu0 0.0
    %323 = vmatpush1.msra.mxu0 0.0
    %324 = vmatprep.subr.mxu0 0.0
    %325 = vmatpush1.msra.mxu0 0.0
    %326 = vmatprep.subr.mxu0 0.0
    %327 = vmatpush1.msra.mxu0 0.0
    %328 = vmatprep.subr.mxu0 0.0
    %329 = vmatpush1.msra.mxu0 0.0
    %330 = vmatprep.subr.mxu0 0.0
    %331 = vmatpush1.msra.mxu0 0.0
    %332 = vmatprep.subr.mxu0 0.0
    %333 = vmatpush1.msra.mxu0 0.0
    %334 = vmatprep.subr.mxu0 0.0
    %335 = vmatpush1.msra.mxu0 0.0
    %336 = vmatprep.subr.mxu0 0.0
    %337 = vmatpush1.msra.mxu0 0.0
    %338 = vmatprep.subr.mxu0 0.0
    %339 = vmatpush1.msra.mxu0 0.0
    %340 = vmatprep.subr.mxu0 0.0
    %341 = vmatpush1.msra.mxu0 0.0
    %342 = vmatprep.subr.mxu0 0.0
    %343 = vmatpush1.msra.mxu0 0.0
    %344 = vmatprep.subr.mxu0 0.0
    %345 = vmatpush1.msra.mxu0 0.0
    %346 = vmatprep.subr.mxu0 0.0
    %347 = vmatpush1.msra.mxu0 0.0
    %348 = vmatprep.subr.mxu0 0.0
    %349 = vmatpush1.msra.mxu0 0.0
    %350 = vmatprep.subr.mxu0 0.0
    %351 = vmatpush1.msra.mxu0 0.0
    %352 = vmatprep.subr.mxu0 0.0
    %353 = vmatpush1.msra.mxu0 0.0
    %354 = vmatprep.subr.mxu0 0.0
    %355 = vmatpush1.msra.mxu0 0.0
    %356 = vmatprep.mubr.f32.mxu0 0.0
    %357 = vmatmul.mubr.f32.gmra.mrb[0].mxu0 %v290
    %v358 = vpop.f32.mrb[0].mxu0
    %v359 = vadd.f32 0.0, %v358
    %v360 = vpop.f32.mrb[0].mxu0
    %361 = vdwg.mxu0
    %v362 = vadd.f32 %v143, %v359
    %v363 = vxor.u32 %v362, 2147483648
    %v364 = vmul.f32 %v363, 1.442695
    %v365 = vpow.pop %v364
    %v366 = vadd.f32 %v365, 1.0
    %v367 = vrcp.pop %v366
    %v368 = vmul.f32 1.0, %v367
    %v369 = vtanh.pop %v362
    %v370 = vmul.f32 %v368, %v286
    %372 = vrot.lane.b32.xlu0 %v369, 64
    %v373 = vpop.permute.xlu0 %372
    %v375 = vmul.f32 %v368, %v373
    %377 = vrot.lane.b32.xlu0 %v375, 32
    %v378 = vpop.permute.xlu0 %377
    %v380 = vadd.f32 %v370, %v378
    %v381 = vtanh.pop %v380
    %383 = vrot.lane.b32.xlu0 %v381, 64
    %v384 = vpop.permute.xlu0 %383
    %v386 = vmul.f32 %v368, %v384
    %vm387 = vcmp.gt.s32.totalorder %v180, 1
    %v388 = vsel %vm387, 1, 0
    %389 = vset.pattern.permute.xlu0 0
    %390 = vperm.xlu0 %389, %v388
    %v391 = vpop.permute.xlu0 %390
    %vm392 = vcmp.eq.s32.totalorder %v391, 1
    %v393 = vsel %vm392, %v386, %v285
    %v394 = vsel %vm392, %v380, %v286
    %396 = vrot.lane.b32.xlu0 %v393, 32
    %v397 = vpop.permute.xlu0 %396
    %v398 = vsel %vm46, %v397, 0
    %400 = vmatprep.subr.mxu0 0.0
    %401 = vmatpush1.msra.mxu0 %v176
    %402 = vmatprep.subr.mxu0 0.0
    %403 = vmatpush1.msra.mxu0 %v177
    %404 = vmatprep.subr.mxu0 0.0
    %405 = vmatpush1.msra.mxu0 %v178
    %406 = vmatprep.subr.mxu0 0.0
    %407 = vmatpush1.msra.mxu0 %v179
    %408 = vmatprep.subr.mxu0 0.0
    %409 = vmatpush1.msra.mxu0 0.0
    %410 = vmatprep.subr.mxu0 0.0
    %411 = vmatpush1.msra.mxu0 0.0
    %412 = vmatprep.subr.mxu0 0.0
    %413 = vmatpush1.msra.mxu0 0.0
    %414 = vmatprep.subr.mxu0 0.0
    %415 = vmatpush1.msra.mxu0 0.0
    %416 = vmatprep.subr.mxu0 0.0
    %417 = vmatpush1.msra.mxu0 0.0
    %418 = vmatprep.subr.mxu0 0.0
    %419 = vmatpush1.msra.mxu0 0.0
    %420 = vmatprep.subr.mxu0 0.0
    %421 = vmatpush1.msra.mxu0 0.0
    %422 = vmatprep.subr.mxu0 0.0
    %423 = vmatpush1.msra.mxu0 0.0
    %424 = vmatprep.subr.mxu0 0.0
    %425 = vmatpush1.msra.mxu0 0.0
    %426 = vmatprep.subr.mxu0 0.0
    %427 = vmatpush1.msra.mxu0 0.0
    %428 = vmatprep.subr.mxu0 0.0
    %429 = vmatpush1.msra.mxu0 0.0
    %430 = vmatprep.subr.mxu0 0.0
    %431 = vmatpush1.msra.mxu0 0.0
    %432 = vmatprep.subr.mxu0 0.0
    %433 = vmatpush1.msra.mxu0 0.0
    %434 = vmatprep.subr.mxu0 0.0
    %435 = vmatpush1.msra.mxu0 0.0
    %436 = vmatprep.subr.mxu0 0.0
    %437 = vmatpush1.msra.mxu0 0.0
    %438 = vmatprep.subr.mxu0 0.0
    %439 = vmatpush1.msra.mxu0 0.0
    %440 = vmatprep.subr.mxu0 0.0
    %441 = vmatpush1.msra.mxu0 0.0
    %442 = vmatprep.subr.mxu0 0.0
    %443 = vmatpush1.msra.mxu0 0.0
    %444 = vmatprep.subr.mxu0 0.0
    %445 = vmatpush1.msra.mxu0 0.0
    %446 = vmatprep.subr.mxu0 0.0
    %447 = vmatpush1.msra.mxu0 0.0
    %448 = vmatprep.subr.mxu0 0.0
    %449 = vmatpush1.msra.mxu0 0.0
    %450 = vmatprep.subr.mxu0 0.0
    %451 = vmatpush1.msra.mxu0 0.0
    %452 = vmatprep.subr.mxu0 0.0
    %453 = vmatpush1.msra.mxu0 0.0
    %454 = vmatprep.subr.mxu0 0.0
    %455 = vmatpush1.msra.mxu0 0.0
    %456 = vmatprep.subr.mxu0 0.0
    %457 = vmatpush1.msra.mxu0 0.0
    %458 = vmatprep.subr.mxu0 0.0
    %459 = vmatpush1.msra.mxu0 0.0
    %460 = vmatprep.subr.mxu0 0.0
    %461 = vmatpush1.msra.mxu0 0.0
    %462 = vmatprep.subr.mxu0 0.0
    %463 = vmatpush1.msra.mxu0 0.0
    %464 = vmatprep.mubr.f32.mxu0 0.0
    %465 = vmatmul.mubr.f32.gmra.mrb[0].mxu0 %v398
    %v466 = vpop.f32.mrb[0].mxu0
    %v467 = vadd.f32 0.0, %v466
    %v468 = vpop.f32.mrb[0].mxu0
    %469 = vdwg.mxu0
    %v470 = vadd.f32 %v148, %v467
    %v471 = vxor.u32 %v470, 2147483648
    %v472 = vmul.f32 %v471, 1.442695
    %v473 = vpow.pop %v472
    %v474 = vadd.f32 %v473, 1.0
    %v475 = vrcp.pop %v474
    %v476 = vmul.f32 1.0, %v475
    %v477 = vtanh.pop %v470
    %v478 = vmul.f32 %v476, %v394
    %480 = vrot.lane.b32.xlu0 %v477, 64
    %v481 = vpop.permute.xlu0 %480
    %v483 = vmul.f32 %v476, %v481
    %485 = vrot.lane.b32.xlu0 %v483, 32
    %v486 = vpop.permute.xlu0 %485
    %v488 = vadd.f32 %v478, %v486
    %v489 = vtanh.pop %v488
    %491 = vrot.lane.b32.xlu0 %v489, 64
    %v492 = vpop.permute.xlu0 %491
    %v494 = vmul.f32 %v476, %v492
    %vm495 = vcmp.gt.s32.totalorder %v180, 2
    %v496 = vsel %vm495, 1, 0
    %497 = vset.pattern.permute.xlu0 0
    %498 = vperm.xlu0 %497, %v496
    %v499 = vpop.permute.xlu0 %498
    %vm500 = vcmp.eq.s32.totalorder %v499, 1
    %v501 = vsel %vm500, %v494, %v393
    %v502 = vsel %vm500, %v488, %v394
    %504 = vrot.lane.b32.xlu0 %v501, 32
    %v505 = vpop.permute.xlu0 %504
    %v506 = vsel %vm46, %v505, 0
    %508 = vmatprep.subr.mxu0 0.0
    %509 = vmatpush1.msra.mxu0 %v176
    %510 = vmatprep.subr.mxu0 0.0
    %511 = vmatpush1.msra.mxu0 %v177
    %512 = vmatprep.subr.mxu0 0.0
    %513 = vmatpush1.msra.mxu0 %v178
    %514 = vmatprep.subr.mxu0 0.0
    %515 = vmatpush1.msra.mxu0 %v179
    %516 = vmatprep.subr.mxu0 0.0
    %517 = vmatpush1.msra.mxu0 0.0
    %518 = vmatprep.subr.mxu0 0.0
    %519 = vmatpush1.msra.mxu0 0.0
    %520 = vmatprep.subr.mxu0 0.0
    %521 = vmatpush1.msra.mxu0 0.0
    %522 = vmatprep.subr.mxu0 0.0
    %523 = vmatpush1.msra.mxu0 0.0
    %524 = vmatprep.subr.mxu0 0.0
    %525 = vmatpush1.msra.mxu0 0.0
    %526 = vmatprep.subr.mxu0 0.0
    %527 = vmatpush1.msra.mxu0 0.0
    %528 = vmatprep.subr.mxu0 0.0
    %529 = vmatpush1.msra.mxu0 0.0
    %530 = vmatprep.subr.mxu0 0.0
    %531 = vmatpush1.msra.mxu0 0.0
    %532 = vmatprep.subr.mxu0 0.0
    %533 = vmatpush1.msra.mxu0 0.0
    %534 = vmatprep.subr.mxu0 0.0
    %535 = vmatpush1.msra.mxu0 0.0
    %536 = vmatprep.subr.mxu0 0.0
    %537 = vmatpush1.msra.mxu0 0.0
    %538 = vmatprep.subr.mxu0 0.0
    %539 = vmatpush1.msra.mxu0 0.0
    %540 = vmatprep.subr.mxu0 0.0
    %541 = vmatpush1.msra.mxu0 0.0
    %542 = vmatprep.subr.mxu0 0.0
    %543 = vmatpush1.msra.mxu0 0.0
    %544 = vmatprep.subr.mxu0 0.0
    %545 = vmatpush1.msra.mxu0 0.0
    %546 = vmatprep.subr.mxu0 0.0
    %547 = vmatpush1.msra.mxu0 0.0
    %548 = vmatprep.subr.mxu0 0.0
    %549 = vmatpush1.msra.mxu0 0.0
    %550 = vmatprep.subr.mxu0 0.0
    %551 = vmatpush1.msra.mxu0 0.0
    %552 = vmatprep.subr.mxu0 0.0
    %553 = vmatpush1.msra.mxu0 0.0
    %554 = vmatprep.subr.mxu0 0.0
    %555 = vmatpush1.msra.mxu0 0.0
    %556 = vmatprep.subr.mxu0 0.0
    %557 = vmatpush1.msra.mxu0 0.0
    %558 = vmatprep.subr.mxu0 0.0
    %559 = vmatpush1.msra.mxu0 0.0
    %560 = vmatprep.subr.mxu0 0.0
    %561 = vmatpush1.msra.mxu0 0.0
    %562 = vmatprep.subr.mxu0 0.0
    %563 = vmatpush1.msra.mxu0 0.0
    %564 = vmatprep.subr.mxu0 0.0
    %565 = vmatpush1.msra.mxu0 0.0
    %566 = vmatprep.subr.mxu0 0.0
    %567 = vmatpush1.msra.mxu0 0.0
    %568 = vmatprep.subr.mxu0 0.0
    %569 = vmatpush1.msra.mxu0 0.0
    %570 = vmatprep.subr.mxu0 0.0
    %571 = vmatpush1.msra.mxu0 0.0
    %572 = vmatprep.mubr.f32.mxu0 0.0
    %573 = vmatmul.mubr.f32.gmra.mrb[0].mxu0 %v506
    %v574 = vpop.f32.mrb[0].mxu0
    %v575 = vadd.f32 0.0, %v574
    %v576 = vpop.f32.mrb[0].mxu0
    %577 = vdwg.mxu0
    %v578 = vadd.f32 %v153, %v575
    %v579 = vxor.u32 %v578, 2147483648
    %v580 = vmul.f32 %v579, 1.442695
    %v581 = vpow.pop %v580
    %v582 = vadd.f32 %v581, 1.0
    %v583 = vrcp.pop %v582
    %v584 = vmul.f32 1.0, %v583
    %v585 = vtanh.pop %v578
    %v586 = vmul.f32 %v584, %v502
    %588 = vrot.lane.b32.xlu0 %v585, 64
    %v589 = vpop.permute.xlu0 %588
    %v591 = vmul.f32 %v584, %v589
    %593 = vrot.lane.b32.xlu0 %v591, 32
    %v594 = vpop.permute.xlu0 %593
    %v596 = vadd.f32 %v586, %v594
    %v597 = vtanh.pop %v596
    %599 = vrot.lane.b32.xlu0 %v597, 64
    %v600 = vpop.permute.xlu0 %599
    %v602 = vmul.f32 %v584, %v600
    %vm603 = vcmp.gt.s32.totalorder %v180, 3
    %v604 = vsel %vm603, 1, 0
    %605 = vset.pattern.permute.xlu0 0
    %606 = vperm.xlu0 %605, %v604
    %v607 = vpop.permute.xlu0 %606
    %vm608 = vcmp.eq.s32.totalorder %v607, 1
    %v609 = vsel %vm608, %v602, %v501
    %v610 = vsel %vm608, %v596, %v502
    %612 = vrot.lane.b32.xlu0 %v609, 32
    %v613 = vpop.permute.xlu0 %612
    %v614 = vsel %vm46, %v613, 0
    %616 = vmatprep.subr.mxu0 0.0
    %617 = vmatpush1.msra.mxu0 %v176
    %618 = vmatprep.subr.mxu0 0.0
    %619 = vmatpush1.msra.mxu0 %v177
    %620 = vmatprep.subr.mxu0 0.0
    %621 = vmatpush1.msra.mxu0 %v178
    %622 = vmatprep.subr.mxu0 0.0
    %623 = vmatpush1.msra.mxu0 %v179
    %624 = vmatprep.subr.mxu0 0.0
    %625 = vmatpush1.msra.mxu0 0.0
    %626 = vmatprep.subr.mxu0 0.0
    %627 = vmatpush1.msra.mxu0 0.0
    %628 = vmatprep.subr.mxu0 0.0
    %629 = vmatpush1.msra.mxu0 0.0
    %630 = vmatprep.subr.mxu0 0.0
    %631 = vmatpush1.msra.mxu0 0.0
    %632 = vmatprep.subr.mxu0 0.0
    %633 = vmatpush1.msra.mxu0 0.0
    %634 = vmatprep.subr.mxu0 0.0
    %635 = vmatpush1.msra.mxu0 0.0
    %636 = vmatprep.subr.mxu0 0.0
    %637 = vmatpush1.msra.mxu0 0.0
    %638 = vmatprep.subr.mxu0 0.0
    %639 = vmatpush1.msra.mxu0 0.0
    %640 = vmatprep.subr.mxu0 0.0
    %641 = vmatpush1.msra.mxu0 0.0
    %642 = vmatprep.subr.mxu0 0.0
    %643 = vmatpush1.msra.mxu0 0.0
    %644 = vmatprep.subr.mxu0 0.0
    %645 = vmatpush1.msra.mxu0 0.0
    %646 = vmatprep.subr.mxu0 0.0
    %647 = vmatpush1.msra.mxu0 0.0
    %648 = vmatprep.subr.mxu0 0.0
    %649 = vmatpush1.msra.mxu0 0.0
    %650 = vmatprep.subr.mxu0 0.0
    %651 = vmatpush1.msra.mxu0 0.0
    %652 = vmatprep.subr.mxu0 0.0
    %653 = vmatpush1.msra.mxu0 0.0
    %654 = vmatprep.subr.mxu0 0.0
    %655 = vmatpush1.msra.mxu0 0.0
    %656 = vmatprep.subr.mxu0 0.0
    %657 = vmatpush1.msra.mxu0 0.0
    %658 = vmatprep.subr.mxu0 0.0
    %659 = vmatpush1.msra.mxu0 0.0
    %660 = vmatprep.subr.mxu0 0.0
    %661 = vmatpush1.msra.mxu0 0.0
    %662 = vmatprep.subr.mxu0 0.0
    %663 = vmatpush1.msra.mxu0 0.0
    %664 = vmatprep.subr.mxu0 0.0
    %665 = vmatpush1.msra.mxu0 0.0
    %666 = vmatprep.subr.mxu0 0.0
    %667 = vmatpush1.msra.mxu0 0.0
    %668 = vmatprep.subr.mxu0 0.0
    %669 = vmatpush1.msra.mxu0 0.0
    %670 = vmatprep.subr.mxu0 0.0
    %671 = vmatpush1.msra.mxu0 0.0
    %672 = vmatprep.subr.mxu0 0.0
    %673 = vmatpush1.msra.mxu0 0.0
    %674 = vmatprep.subr.mxu0 0.0
    %675 = vmatpush1.msra.mxu0 0.0
    %676 = vmatprep.subr.mxu0 0.0
    %677 = vmatpush1.msra.mxu0 0.0
    %678 = vmatprep.subr.mxu0 0.0
    %679 = vmatpush1.msra.mxu0 0.0
    %680 = vmatprep.mubr.f32.mxu0 0.0
    %681 = vmatmul.mubr.f32.gmra.mrb[0].mxu0 %v614
    %v682 = vpop.f32.mrb[0].mxu0
    %v683 = vadd.f32 0.0, %v682
    %v684 = vpop.f32.mrb[0].mxu0
    %685 = vdwg.mxu0
    %v686 = vadd.f32 %v158, %v683
    %v687 = vxor.u32 %v686, 2147483648
    %v688 = vmul.f32 %v687, 1.442695
    %v689 = vpow.pop %v688
    %v690 = vadd.f32 %v689, 1.0
    %v691 = vrcp.pop %v690
    %v692 = vmul.f32 1.0, %v691
    %v693 = vtanh.pop %v686
    %v694 = vmul.f32 %v692, %v610
    %696 = vrot.lane.b32.xlu0 %v693, 64
    %v697 = vpop.permute.xlu0 %696
    %v699 = vmul.f32 %v692, %v697
    %701 = vrot.lane.b32.xlu0 %v699, 32
    %v702 = vpop.permute.xlu0 %701
    %v704 = vadd.f32 %v694, %v702
    %v705 = vtanh.pop %v704
    %707 = vrot.lane.b32.xlu0 %v705, 64
    %v708 = vpop.permute.xlu0 %707
    %v710 = vmul.f32 %v692, %v708
    %vm711 = vcmp.gt.s32.totalorder %v180, 4
    %v712 = vsel %vm711, 1, 0
    %713 = vset.pattern.permute.xlu0 0
    %714 = vperm.xlu0 %713, %v712
    %v715 = vpop.permute.xlu0 %714
    %vm716 = vcmp.eq.s32.totalorder %v715, 1
    %v717 = vsel %vm716, %v710, %v609
    %v718 = vsel %vm716, %v704, %v610
    %720 = vrot.lane.b32.xlu0 %v717, 32
    %v721 = vpop.permute.xlu0 %720
    %v722 = vsel %vm46, %v721, 0
    %724 = vmatprep.subr.mxu0 0.0
    %725 = vmatpush1.msra.mxu0 %v176
    %726 = vmatprep.subr.mxu0 0.0
    %727 = vmatpush1.msra.mxu0 %v177
    %728 = vmatprep.subr.mxu0 0.0
    %729 = vmatpush1.msra.mxu0 %v178
    %730 = vmatprep.subr.mxu0 0.0
    %731 = vmatpush1.msra.mxu0 %v179
    %732 = vmatprep.subr.mxu0 0.0
    %733 = vmatpush1.msra.mxu0 0.0
    %734 = vmatprep.subr.mxu0 0.0
    %735 = vmatpush1.msra.mxu0 0.0
    %736 = vmatprep.subr.mxu0 0.0
    %737 = vmatpush1.msra.mxu0 0.0
    %738 = vmatprep.subr.mxu0 0.0
    %739 = vmatpush1.msra.mxu0 0.0
    %740 = vmatprep.subr.mxu0 0.0
    %741 = vmatpush1.msra.mxu0 0.0
    %742 = vmatprep.subr.mxu0 0.0
    %743 = vmatpush1.msra.mxu0 0.0
    %744 = vmatprep.subr.mxu0 0.0
    %745 = vmatpush1.msra.mxu0 0.0
    %746 = vmatprep.subr.mxu0 0.0
    %747 = vmatpush1.msra.mxu0 0.0
    %748 = vmatprep.subr.mxu0 0.0
    %749 = vmatpush1.msra.mxu0 0.0
    %750 = vmatprep.subr.mxu0 0.0
    %751 = vmatpush1.msra.mxu0 0.0
    %752 = vmatprep.subr.mxu0 0.0
    %753 = vmatpush1.msra.mxu0 0.0
    %754 = vmatprep.subr.mxu0 0.0
    %755 = vmatpush1.msra.mxu0 0.0
    %756 = vmatprep.subr.mxu0 0.0
    %757 = vmatpush1.msra.mxu0 0.0
    %758 = vmatprep.subr.mxu0 0.0
    %759 = vmatpush1.msra.mxu0 0.0
    %760 = vmatprep.subr.mxu0 0.0
    %761 = vmatpush1.msra.mxu0 0.0
    %762 = vmatprep.subr.mxu0 0.0
    %763 = vmatpush1.msra.mxu0 0.0
    %764 = vmatprep.subr.mxu0 0.0
    %765 = vmatpush1.msra.mxu0 0.0
    %766 = vmatprep.subr.mxu0 0.0
    %767 = vmatpush1.msra.mxu0 0.0
    %768 = vmatprep.subr.mxu0 0.0
    %769 = vmatpush1.msra.mxu0 0.0
    %770 = vmatprep.subr.mxu0 0.0
    %771 = vmatpush1.msra.mxu0 0.0
    %772 = vmatprep.subr.mxu0 0.0
    %773 = vmatpush1.msra.mxu0 0.0
    %774 = vmatprep.subr.mxu0 0.0
    %775 = vmatpush1.msra.mxu0 0.0
    %776 = vmatprep.subr.mxu0 0.0
    %777 = vmatpush1.msra.mxu0 0.0
    %778 = vmatprep.subr.mxu0 0.0
    %779 = vmatpush1.msra.mxu0 0.0
    %780 = vmatprep.subr.mxu0 0.0
    %781 = vmatpush1.msra.mxu0 0.0
    %782 = vmatprep.subr.mxu0 0.0
    %783 = vmatpush1.msra.mxu0 0.0
    %784 = vmatprep.subr.mxu0 0.0
    %785 = vmatpush1.msra.mxu0 0.0
    %786 = vmatprep.subr.mxu0 0.0
    %787 = vmatpush1.msra.mxu0 0.0
    %788 = vmatprep.mubr.f32.mxu0 0.0
    %789 = vmatmul.mubr.f32.gmra.mrb[0].mxu0 %v722
    %v790 = vpop.f32.mrb[0].mxu0
    %v791 = vadd.f32 0.0, %v790
    %v792 = vpop.f32.mrb[0].mxu0
    %793 = vdwg.mxu0
    %v794 = vadd.f32 %v163, %v791
    %v795 = vxor.u32 %v794, 2147483648
    %v796 = vmul.f32 %v795, 1.442695
    %v797 = vpow.pop %v796
    %v798 = vadd.f32 %v797, 1.0
    %v799 = vrcp.pop %v798
    %v800 = vmul.f32 1.0, %v799
    %v801 = vtanh.pop %v794
    %v802 = vmul.f32 %v800, %v718
    %804 = vrot.lane.b32.xlu0 %v801, 64
    %v805 = vpop.permute.xlu0 %804
    %v807 = vmul.f32 %v800, %v805
    %809 = vrot.lane.b32.xlu0 %v807, 32
    %v810 = vpop.permute.xlu0 %809
    %v812 = vadd.f32 %v802, %v810
    %v813 = vtanh.pop %v812
    %815 = vrot.lane.b32.xlu0 %v813, 64
    %v816 = vpop.permute.xlu0 %815
    %v818 = vmul.f32 %v800, %v816
    %vm819 = vcmp.gt.s32.totalorder %v180, 5
    %v820 = vsel %vm819, 1, 0
    %821 = vset.pattern.permute.xlu0 0
    %822 = vperm.xlu0 %821, %v820
    %v823 = vpop.permute.xlu0 %822
    %vm824 = vcmp.eq.s32.totalorder %v823, 1
    %v825 = vsel %vm824, %v818, %v717
    %v826 = vsel %vm824, %v812, %v718
    %828 = vrot.lane.b32.xlu0 %v825, 32
    %v829 = vpop.permute.xlu0 %828
    %v830 = vsel %vm46, %v829, 0
    %832 = vmatprep.subr.mxu0 0.0
    %833 = vmatpush1.msra.mxu0 %v176
    %834 = vmatprep.subr.mxu0 0.0
    %835 = vmatpush1.msra.mxu0 %v177
    %836 = vmatprep.subr.mxu0 0.0
    %837 = vmatpush1.msra.mxu0 %v178
    %838 = vmatprep.subr.mxu0 0.0
    %839 = vmatpush1.msra.mxu0 %v179
    %840 = vmatprep.subr.mxu0 0.0
    %841 = vmatpush1.msra.mxu0 0.0
    %842 = vmatprep.subr.mxu0 0.0
    %843 = vmatpush1.msra.mxu0 0.0
    %844 = vmatprep.subr.mxu0 0.0
    %845 = vmatpush1.msra.mxu0 0.0
    %846 = vmatprep.subr.mxu0 0.0
    %847 = vmatpush1.msra.mxu0 0.0
    %848 = vmatprep.subr.mxu0 0.0
    %849 = vmatpush1.msra.mxu0 0.0
    %850 = vmatprep.subr.mxu0 0.0
    %851 = vmatpush1.msra.mxu0 0.0
    %852 = vmatprep.subr.mxu0 0.0
    %853 = vmatpush1.msra.mxu0 0.0
    %854 = vmatprep.subr.mxu0 0.0
    %855 = vmatpush1.msra.mxu0 0.0
    %856 = vmatprep.subr.mxu0 0.0
    %857 = vmatpush1.msra.mxu0 0.0
    %858 = vmatprep.subr.mxu0 0.0
    %859 = vmatpush1.msra.mxu0 0.0
    %860 = vmatprep.subr.mxu0 0.0
    %861 = vmatpush1.msra.mxu0 0.0
    %862 = vmatprep.subr.mxu0 0.0
    %863 = vmatpush1.msra.mxu0 0.0
    %864 = vmatprep.subr.mxu0 0.0
    %865 = vmatpush1.msra.mxu0 0.0
    %866 = vmatprep.subr.mxu0 0.0
    %867 = vmatpush1.msra.mxu0 0.0
    %868 = vmatprep.subr.mxu0 0.0
    %869 = vmatpush1.msra.mxu0 0.0
    %870 = vmatprep.subr.mxu0 0.0
    %871 = vmatpush1.msra.mxu0 0.0
    %872 = vmatprep.subr.mxu0 0.0
    %873 = vmatpush1.msra.mxu0 0.0
    %874 = vmatprep.subr.mxu0 0.0
    %875 = vmatpush1.msra.mxu0 0.0
    %876 = vmatprep.subr.mxu0 0.0
    %877 = vmatpush1.msra.mxu0 0.0
    %878 = vmatprep.subr.mxu0 0.0
    %879 = vmatpush1.msra.mxu0 0.0
    %880 = vmatprep.subr.mxu0 0.0
    %881 = vmatpush1.msra.mxu0 0.0
    %882 = vmatprep.subr.mxu0 0.0
    %883 = vmatpush1.msra.mxu0 0.0
    %884 = vmatprep.subr.mxu0 0.0
    %885 = vmatpush1.msra.mxu0 0.0
    %886 = vmatprep.subr.mxu0 0.0
    %887 = vmatpush1.msra.mxu0 0.0
    %888 = vmatprep.subr.mxu0 0.0
    %889 = vmatpush1.msra.mxu0 0.0
    %890 = vmatprep.subr.mxu0 0.0
    %891 = vmatpush1.msra.mxu0 0.0
    %892 = vmatprep.subr.mxu0 0.0
    %893 = vmatpush1.msra.mxu0 0.0
    %894 = vmatprep.subr.mxu0 0.0
    %895 = vmatpush1.msra.mxu0 0.0
    %896 = vmatprep.mubr.f32.mxu0 0.0
    %897 = vmatmul.mubr.f32.gmra.mrb[0].mxu0 %v830
    %v898 = vpop.f32.mrb[0].mxu0
    %v899 = vadd.f32 0.0, %v898
    %v900 = vpop.f32.mrb[0].mxu0
    %901 = vdwg.mxu0
    %v902 = vadd.f32 %v168, %v899
    %v903 = vxor.u32 %v902, 2147483648
    %v904 = vmul.f32 %v903, 1.442695
    %v905 = vpow.pop %v904
    %v906 = vadd.f32 %v905, 1.0
    %v907 = vrcp.pop %v906
    %v908 = vmul.f32 1.0, %v907
    %v909 = vtanh.pop %v902
    %v910 = vmul.f32 %v908, %v826
    %912 = vrot.lane.b32.xlu0 %v909, 64
    %v913 = vpop.permute.xlu0 %912
    %v915 = vmul.f32 %v908, %v913
    %917 = vrot.lane.b32.xlu0 %v915, 32
    %v918 = vpop.permute.xlu0 %917
    %v920 = vadd.f32 %v910, %v918
    %v921 = vtanh.pop %v920
    %923 = vrot.lane.b32.xlu0 %v921, 64
    %v924 = vpop.permute.xlu0 %923
    %v926 = vmul.f32 %v908, %v924
    %vm927 = vcmp.gt.s32.totalorder %v180, 6
    %v928 = vsel %vm927, 1, 0
    %929 = vset.pattern.permute.xlu0 0
    %930 = vperm.xlu0 %929, %v928
    %v931 = vpop.permute.xlu0 %930
    %vm932 = vcmp.eq.s32.totalorder %v931, 1
    %v933 = vsel %vm932, %v926, %v825
    %v934 = vsel %vm932, %v920, %v826
    %936 = vrot.lane.b32.xlu0 %v933, 32
    %v937 = vpop.permute.xlu0 %936
    %v938 = vsel %vm46, %v937, 0
    %940 = vmatprep.subr.mxu0 0.0
    %941 = vmatpush1.msra.mxu0 %v176
    %942 = vmatprep.subr.mxu0 0.0
    %943 = vmatpush1.msra.mxu0 %v177
    %944 = vmatprep.subr.mxu0 0.0
    %945 = vmatpush1.msra.mxu0 %v178
    %946 = vmatprep.subr.mxu0 0.0
    %947 = vmatpush1.msra.mxu0 %v179
    %948 = vmatprep.subr.mxu0 0.0
    %949 = vmatpush1.msra.mxu0 0.0
    %950 = vmatprep.subr.mxu0 0.0
    %951 = vmatpush1.msra.mxu0 0.0
    %952 = vmatprep.subr.mxu0 0.0
    %953 = vmatpush1.msra.mxu0 0.0
    %954 = vmatprep.subr.mxu0 0.0
    %955 = vmatpush1.msra.mxu0 0.0
    %956 = vmatprep.subr.mxu0 0.0
    %957 = vmatpush1.msra.mxu0 0.0
    %958 = vmatprep.subr.mxu0 0.0
    %959 = vmatpush1.msra.mxu0 0.0
    %960 = vmatprep.subr.mxu0 0.0
    %961 = vmatpush1.msra.mxu0 0.0
    %962 = vmatprep.subr.mxu0 0.0
    %963 = vmatpush1.msra.mxu0 0.0
    %964 = vmatprep.subr.mxu0 0.0
    %965 = vmatpush1.msra.mxu0 0.0
    %966 = vmatprep.subr.mxu0 0.0
    %967 = vmatpush1.msra.mxu0 0.0
    %968 = vmatprep.subr.mxu0 0.0
    %969 = vmatpush1.msra.mxu0 0.0
    %970 = vmatprep.subr.mxu0 0.0
    %971 = vmatpush1.msra.mxu0 0.0
    %972 = vmatprep.subr.mxu0 0.0
    %973 = vmatpush1.msra.mxu0 0.0
    %974 = vmatprep.subr.mxu0 0.0
    %975 = vmatpush1.msra.mxu0 0.0
    %976 = vmatprep.subr.mxu0 0.0
    %977 = vmatpush1.msra.mxu0 0.0
    %978 = vmatprep.subr.mxu0 0.0
    %979 = vmatpush1.msra.mxu0 0.0
    %980 = vmatprep.subr.mxu0 0.0
    %981 = vmatpush1.msra.mxu0 0.0
    %982 = vmatprep.subr.mxu0 0.0
    %983 = vmatpush1.msra.mxu0 0.0
    %984 = vmatprep.subr.mxu0 0.0
    %985 = vmatpush1.msra.mxu0 0.0
    %986 = vmatprep.subr.mxu0 0.0
    %987 = vmatpush1.msra.mxu0 0.0
    %988 = vmatprep.subr.mxu0 0.0
    %989 = vmatpush1.msra.mxu0 0.0
    %990 = vmatprep.subr.mxu0 0.0
    %991 = vmatpush1.msra.mxu0 0.0
    %992 = vmatprep.subr.mxu0 0.0
    %993 = vmatpush1.msra.mxu0 0.0
    %994 = vmatprep.subr.mxu0 0.0
    %995 = vmatpush1.msra.mxu0 0.0
    %996 = vmatprep.subr.mxu0 0.0
    %997 = vmatpush1.msra.mxu0 0.0
    %998 = vmatprep.subr.mxu0 0.0
    %999 = vmatpush1.msra.mxu0 0.0
    %1000 = vmatprep.subr.mxu0 0.0
    %1001 = vmatpush1.msra.mxu0 0.0
    %1002 = vmatprep.subr.mxu0 0.0
    %1003 = vmatpush1.msra.mxu0 0.0
    %1004 = vmatprep.mubr.f32.mxu0 0.0
    %1005 = vmatmul.mubr.f32.gmra.mrb[0].mxu0 %v938
    %v1006 = vpop.f32.mrb[0].mxu0
    %v1007 = vadd.f32 0.0, %v1006
    %v1008 = vpop.f32.mrb[0].mxu0
    %1009 = vdwg.mxu0
    %v1010 = vadd.f32 %v173, %v1007
    %v1011 = vxor.u32 %v1010, 2147483648
    %v1012 = vmul.f32 %v1011, 1.442695
    %v1013 = vpow.pop %v1012
    %v1014 = vadd.f32 %v1013, 1.0
    %v1015 = vrcp.pop %v1014
    %v1016 = vmul.f32 1.0, %v1015
    %v1017 = vtanh.pop %v1010
    %v1018 = vmul.f32 %v1016, %v934
    %1020 = vrot.lane.b32.xlu0 %v1017, 64
    %v1021 = vpop.permute.xlu0 %1020
    %v1023 = vmul.f32 %v1016, %v1021
    %1025 = vrot.lane.b32.xlu0 %v1023, 32
    %v1026 = vpop.permute.xlu0 %1025
    %v1028 = vadd.f32 %v1018, %v1026
    %v1029 = vtanh.pop %v1028
    %1031 = vrot.lane.b32.xlu0 %v1029, 64
    %v1032 = vpop.permute.xlu0 %1031
    %v1034 = vmul.f32 %v1016, %v1032
    %vm1035 = vcmp.gt.s32.totalorder %v180, 7
    %v1036 = vsel %vm1035, 1, 0
    %1037 = vset.pattern.permute.xlu0 0
    %1038 = vperm.xlu0 %1037, %v1036
    %v1039 = vpop.permute.xlu0 %1038
    %vm1040 = vcmp.eq.s32.totalorder %v1039, 1
    %v1041 = vsel %vm1040, %v1034, %v933
    %v1042 = vld [vmem:[%s5] sm:$0xff]
    %v1043 = vld [vmem:[%s5 + $0x8] sm:$0xff]
    %v1044 = vld [vmem:[%s5 + $0x10] sm:$0xff]
    %v1045 = vld [vmem:[%s5 + $0x18] sm:$0xff]
    %v1046 = vld [vmem:[%s6] sm:$0x1]
    %v1048 = vlaneseq
    %v1049 = vshrl.u32 %v1048, 7
    %v1050 = vsub.s32 0, %v1049
    %v1051 = vrot.slane %v1046, %v1050
    %1054 = vrot.lane.b32.xlu0 %v1041, 32
    %v1055 = vpop.permute.xlu0 %1054
    %v1056 = vsel %vm46, %v1055, 0
    %1058 = vmatprep.subr.mxu0 0.0
    %1059 = vmatpush1.msra.mxu0 %v1042
    %1060 = vmatprep.subr.mxu0 0.0
    %1061 = vmatpush1.msra.mxu0 %v1043
    %1062 = vmatprep.subr.mxu0 0.0
    %1063 = vmatpush1.msra.mxu0 %v1044
    %1064 = vmatprep.subr.mxu0 0.0
    %1065 = vmatpush1.msra.mxu0 %v1045
    %1066 = vmatprep.subr.mxu0 0.0
    %1067 = vmatpush1.msra.mxu0 0.0
    %1068 = vmatprep.subr.mxu0 0.0
    %1069 = vmatpush1.msra.mxu0 0.0
    %1070 = vmatprep.subr.mxu0 0.0
    %1071 = vmatpush1.msra.mxu0 0.0
    %1072 = vmatprep.subr.mxu0 0.0
    %1073 = vmatpush1.msra.mxu0 0.0
    %1074 = vmatprep.subr.mxu0 0.0
    %1075 = vmatpush1.msra.mxu0 0.0
    %1076 = vmatprep.subr.mxu0 0.0
    %1077 = vmatpush1.msra.mxu0 0.0
    %1078 = vmatprep.subr.mxu0 0.0
    %1079 = vmatpush1.msra.mxu0 0.0
    %1080 = vmatprep.subr.mxu0 0.0
    %1081 = vmatpush1.msra.mxu0 0.0
    %1082 = vmatprep.subr.mxu0 0.0
    %1083 = vmatpush1.msra.mxu0 0.0
    %1084 = vmatprep.subr.mxu0 0.0
    %1085 = vmatpush1.msra.mxu0 0.0
    %1086 = vmatprep.subr.mxu0 0.0
    %1087 = vmatpush1.msra.mxu0 0.0
    %1088 = vmatprep.subr.mxu0 0.0
    %1089 = vmatpush1.msra.mxu0 0.0
    %1090 = vmatprep.subr.mxu0 0.0
    %1091 = vmatpush1.msra.mxu0 0.0
    %1092 = vmatprep.subr.mxu0 0.0
    %1093 = vmatpush1.msra.mxu0 0.0
    %1094 = vmatprep.subr.mxu0 0.0
    %1095 = vmatpush1.msra.mxu0 0.0
    %1096 = vmatprep.subr.mxu0 0.0
    %1097 = vmatpush1.msra.mxu0 0.0
    %1098 = vmatprep.subr.mxu0 0.0
    %1099 = vmatpush1.msra.mxu0 0.0
    %1100 = vmatprep.subr.mxu0 0.0
    %1101 = vmatpush1.msra.mxu0 0.0
    %1102 = vmatprep.subr.mxu0 0.0
    %1103 = vmatpush1.msra.mxu0 0.0
    %1104 = vmatprep.subr.mxu0 0.0
    %1105 = vmatpush1.msra.mxu0 0.0
    %1106 = vmatprep.subr.mxu0 0.0
    %1107 = vmatpush1.msra.mxu0 0.0
    %1108 = vmatprep.subr.mxu0 0.0
    %1109 = vmatpush1.msra.mxu0 0.0
    %1110 = vmatprep.subr.mxu0 0.0
    %1111 = vmatpush1.msra.mxu0 0.0
    %1112 = vmatprep.subr.mxu0 0.0
    %1113 = vmatpush1.msra.mxu0 0.0
    %1114 = vmatprep.subr.mxu0 0.0
    %1115 = vmatpush1.msra.mxu0 0.0
    %1116 = vmatprep.subr.mxu0 0.0
    %1117 = vmatpush1.msra.mxu0 0.0
    %1118 = vmatprep.subr.mxu0 0.0
    %1119 = vmatpush1.msra.mxu0 0.0
    %1120 = vmatprep.subr.mxu0 0.0
    %1121 = vmatpush1.msra.mxu0 0.0
    %1122 = vmatprep.mubr.f32.mxu0 0.0
    %1123 = vmatmul.mubr.f32.gmra.mrb[0].mxu0 %v1056
    %v1124 = vpop.f32.mrb[0].mxu0
    %v1125 = vadd.f32 %v1051, %v1124
    %v1126 = vpop.f32.mrb[0].mxu0
    %1127 = vdwg.mxu0
    %1128 = vst [vmem:[#allocation2] sm:$0xff] %v1125
    // Predicated region
    $region30: #{tpu_custom_call.1} parent=1 // pred_check
      _
    $region31: #{tpu_custom_call.1} parent=1 // pred_check_branch
      %1130 = sbr.rel (0) target = $region33
    $region32: #{tpu_custom_call.1} parent=1 // pred_region
      %s1132 = ssub.s32 128, 128
      %1133 = vsyncadd [#allocation3], %s1132
      %s1135 = sshll.u32 [#allocation2], 4
      %s1136 = int_to_ptr.vmem [resolvable:$true] %s1135
      %1138 = dma.vmem_to_hbm [thread:$0]  %s1136, 128, %s7, [#allocation3]
    $region33: #{tpu_custom_call.1} parent=1 // pred_fallthru
      _
    // Predicated region
    $region34: #{tpu_custom_call.1} parent=1 // pred_check
      _
    $region35: #{tpu_custom_call.1} parent=1 // pred_check_branch
      %1140 = sbr.rel (0) target = $region37
    $region36: #{tpu_custom_call.1} parent=1 // pred_region
      %1141 = dma.done [#allocation3], 128
    $region37: #{tpu_custom_call.1} parent=1 // pred_fallthru
      _
    %1142 = vsyncpa [#allocation3], 1

</llo_original>
